<compile_context>
chip_gen: v5e
topology: v5e:2x2
jax: 0.10.0
libtpu: 0.0.40
codegen_flags: <defaults>
</compile_context>

<pallas_src>
import functools

import jax
import jax.numpy as jnp
from jax.experimental import pallas as pl
from jax.experimental.pallas import tpu as pltpu

EPS = 1e-5
LANE = 128


def _round_up(x, m):
    return (x + m - 1) // m * m


# ----------------------------- Pallas kernels ------------------------------ #
def _conv_stats_kernel(p_ref, w_ref, y_ref, sum_ref, ssq_ref, acc_ref):
    """Conv-as-matmul with K-tiling + per-M-tile BN partial statistics.

    Grid = (M tiles [parallel], K tiles [arbitrary]).  acc_ref is an f32 VMEM
    accumulator; y / sum / ssq are written once per M tile at the last K step.
    Partial sums are kept as (8, Cp) (sublane-deferred) so the per-step work is
    pure VALU adds; the final sublane/tile reduce happens in the JAX wrapper.
    """
    k = pl.program_id(1)

    @pl.when(k == 0)
    def _():
        acc_ref[...] = jnp.zeros_like(acc_ref)

    acc_ref[...] += jnp.dot(p_ref[...], w_ref[...],
                            preferred_element_type=jnp.float32)

    @pl.when(k == pl.num_programs(1) - 1)
    def _():
        y = acc_ref[...]
        y_ref[...] = y.astype(y_ref.dtype)
        tm, cp = y.shape
        yr = y.reshape(tm // 8, 8, cp)
        sum_ref[...] = jnp.sum(yr, axis=0)          # (8, Cp) partial
        ssq_ref[...] = jnp.sum(yr * yr, axis=0)     # (8, Cp) partial


def _bn_act_res_kernel(y_ref, scale_ref, shift_ref,
                       sc_ref, sc_scale_ref, sc_shift_ref, o_ref):
    """Folded BN2 + ReLU, fused shortcut-BN apply, residual add, final ReLU."""
    h = jnp.maximum(
        y_ref[...].astype(jnp.float32) * scale_ref[...] + shift_ref[...], 0.0)
    s = sc_ref[...].astype(jnp.float32) * sc_scale_ref[...] + sc_shift_ref[...]
    o_ref[...] = jnp.maximum(h + s, 0.0).astype(o_ref.dtype)


# --------------------------- pallas_call wrappers --------------------------- #
def _conv_stats(patches, w2d, *, tm, tk, out_dtype):
    Mp, Kp = patches.shape
    Cp = w2d.shape[1]
    nmt, nkt = Mp // tm, Kp // tk

    in_bytes = jnp.dtype(patches.dtype).itemsize
    out_bytes = jnp.dtype(out_dtype).itemsize
    need = (2 * tm * tk * in_bytes        # patch tiles (double-buffered)
            + 2 * tk * Cp * in_bytes      # weight tiles
            + 2 * tm * Cp * out_bytes     # y tiles
            + 4 * 8 * Cp * 4              # sum/ssq tiles
            + tm * Cp * 4)                # f32 accumulator scratch
    vmem_limit = int(min(64 << 20, max(32 << 20, 2 * need + (4 << 20))))

    return pl.pallas_call(
        _conv_stats_kernel,
        grid=(nmt, nkt),
        out_shape=(
            jax.ShapeDtypeStruct((Mp, Cp), out_dtype),        # conv output rows
            jax.ShapeDtypeStruct((nmt, 8, Cp), jnp.float32),  # per-tile sum partials
            jax.ShapeDtypeStruct((nmt, 8, Cp), jnp.float32),  # per-tile sumsq partials
        ),
        in_specs=[
            pl.BlockSpec((tm, tk), lambda i, j: (i, j)),
            pl.BlockSpec((tk, Cp), lambda i, j: (j, 0)),
        ],
        out_specs=(
            pl.BlockSpec((tm, Cp), lambda i, j: (i, 0)),
            pl.BlockSpec((None, 8, Cp), lambda i, j: (i, 0, 0)),
            pl.BlockSpec((None, 8, Cp), lambda i, j: (i, 0, 0)),
        ),
        scratch_shapes=[pltpu.VMEM((tm, Cp), jnp.float32)],
        compiler_params=pltpu.CompilerParams(
            dimension_semantics=("parallel", "arbitrary"),    # M shards on v7x megacore
            vmem_limit_bytes=vmem_limit),
    )(patches, w2d)


def _bn_act_res(y, scale, shift, sc, sc_scale, sc_shift, *, tm):
    Mp, Cp = y.shape
    row_y = pl.BlockSpec((tm, Cp), lambda i: (i, 0))
    par = pl.BlockSpec((1, Cp), lambda i: (0, 0))
    return pl.pallas_call(
        _bn_act_res_kernel,
        grid=(Mp // tm,),
        out_shape=jax.ShapeDtypeStruct((Mp, Cp), jnp.float32),
        in_specs=[row_y, par, par, row_y, par, par],
        out_specs=row_y,
        compiler_params=pltpu.CompilerParams(
            dimension_semantics=("parallel",)),
    )(y, scale, shift, sc, sc_scale, sc_shift)


# ------------------------------- JAX glue ---------------------------------- #
def _im2col(x_nhwc, ksize, stride, padding):
    """Patch rows [N*Ho*Wo, k*k*Cin], K ordered (dy, dx, cin)."""
    N, H, W, C = x_nhwc.shape
    xp = jnp.pad(x_nhwc, ((0, 0), (padding, padding), (padding, padding), (0, 0)))
    Ho = (H + 2 * padding - ksize) // stride + 1
    Wo = (W + 2 * padding - ksize) // stride + 1
    cols = []
    for dy in range(ksize):
        for dx in range(ksize):
            cols.append(xp[:, dy:dy + stride * Ho:stride, dx:dx + stride * Wo:stride, :])
    patches = jnp.concatenate(cols, axis=-1)                 # (N, Ho, Wo, k*k*C)
    return patches.reshape(N * Ho * Wo, ksize * ksize * C), (Ho, Wo)


def _w_to_2d(w_oihw):
    """PyTorch (Cout, Cin, kh, kw) -> [kh*kw*Cin, Cout] matching _im2col order."""
    return jnp.transpose(w_oihw, (2, 3, 1, 0)).reshape(-1, w_oihw.shape[0])


def _pad2(a, rows, cols):
    r, c = a.shape
    return jnp.pad(a, ((0, rows - r), (0, cols - c)))


def _pad_vec(v, n):
    return jnp.zeros((1, n), jnp.float32).at[0, :v.shape[0]].set(v.astype(jnp.float32))


def _pick_tk(kp, tk_max):
    """Largest multiple of LANE <= tk_max that divides kp (kp is a LANE multiple)."""
    t = max(LANE, (min(tk_max, kp) // LANE) * LANE)
    while kp % t:
        t -= LANE
    return t


def _bn_fold(s, ss, m_true, gamma, beta):
    """Fold training-mode BN into per-channel scale/shift from streamed stats.

    s/ss are (num_tiles, 8, Cp) f32 partials; the tiny final reduce lives here.
    """
    cp = s.shape[-1]
    s_tot = jnp.sum(s, axis=(0, 1))[None, :]                 # (1, Cp)
    ss_tot = jnp.sum(ss, axis=(0, 1))[None, :]
    mean = s_tot / m_true
    var = jnp.maximum(ss_tot / m_true - mean * mean, 0.0)    # biased batch var
    inv = jax.lax.rsqrt(var + EPS)
    scale = _pad_vec(gamma, cp) * inv
    shift = _pad_vec(beta, cp) - mean * scale
    return scale, shift


def _conv_bn_stats(x_nhwc, w_oihw, ksize, stride, padding, compute_dtype, tm, tk):
    """im2col (compute_dtype) + lane/row padding + tiled conv matmul with stats."""
    p, (ho, wo) = _im2col(x_nhwc.astype(compute_dtype), ksize, stride, padding)
    m, k = p.shape
    tm_eff = min(_round_up(tm, 8), _round_up(m, 256))
    mp, kp = _round_up(m, tm_eff), _round_up(k, LANE)
    tk_eff = _pick_tk(kp, tk)
    w2d = _w_to_2d(w_oihw)
    cp = _round_up(w2d.shape[1], LANE)
    p_pad = _pad2(p, mp, kp)
    w_pad = _pad2(w2d, kp, cp).astype(compute_dtype)
    y, s, ss = _conv_stats(p_pad, w_pad, tm=tm_eff, tk=tk_eff, out_dtype=compute_dtype)
    return y, s, ss, (ho, wo), m, tm_eff


@functools.partial(jax.jit, static_argnames=("downsample", "compute_dtype", "tm", "tk"))
def resblock_forward(x_nchw, params, downsample, compute_dtype=jnp.bfloat16,
                     tm=512, tk=512):
    x = jnp.transpose(x_nchw, (0, 2, 3, 1)).astype(jnp.float32)   # NHWC
    N, H, W, Cin = x.shape
    Cout = params["conv1_w"].shape[0]
    Cp = _round_up(Cout, LANE)
    stride1 = 2 if downsample else 1

    # conv1 (streamed stats); BN1 fold + apply + ReLU in plain jnp so XLA fuses
    # it straight into the conv2 im2col producer chain (no extra HBM round trip)
    y1, s1, ss1, (H1, W1), M, tm_eff = _conv_bn_stats(
        x, params["conv1_w"], 3, stride1, 1, compute_dtype, tm, tk)
    sc1, sh1 = _bn_fold(s1, ss1, M, params["bn1_g"], params["bn1_b"])
    h = jnp.maximum(
        y1[:M, :Cout].astype(jnp.float32) * sc1[0, :Cout] + sh1[0, :Cout], 0.0)
    h_nhwc = h.astype(compute_dtype).reshape(N, H1, W1, Cout)

    # conv2 + bn2 stats
    y2, s2, ss2, _, _, _ = _conv_bn_stats(
        h_nhwc, params["conv2_w"], 3, 1, 1, compute_dtype, tm, tk)
    sc2, sh2 = _bn_fold(s2, ss2, M, params["bn2_g"], params["bn2_b"])
    Mp = y2.shape[0]

    # shortcut: raw rows + folded per-channel scale/shift; its BN application
    # is fused into the final residual kernel (no normalized-sc HBM round trip)
    if downsample:
        ysc, s_s, ss_s, _, _, _ = _conv_bn_stats(
            x, params["sc_w"], 1, 2, 0, compute_dtype, tm, tk)
        scs, shs = _bn_fold(s_s, ss_s, M, params["sc_bn_g"], params["sc_bn_b"])
    else:
        assert Cin == Cout, "identity shortcut requires in_channels == out_channels"
        ysc = _pad2(x.reshape(M, Cin).astype(compute_dtype), Mp, Cp)
        scs = jnp.ones((1, Cp), jnp.float32)
        shs = jnp.zeros((1, Cp), jnp.float32)

    # bn2-apply + ReLU + shortcut-BN-apply + residual add + ReLU, one fused pass
    out = _bn_act_res(y2, sc2, sh2, ysc, scs, shs, tm=tm_eff)
    out = out[:M, :Cout].reshape(N, H1, W1, Cout)
    return jnp.transpose(out, (0, 3, 1, 2))                  # back to NCHW


# ---------------------- deterministic parameter init ----------------------- #
def init_params(key, in_ch, out_ch, downsample):
    ks = jax.random.split(key, 6)
    params = {
        "conv1_w": 0.1 * jax.random.normal(ks[0], (out_ch, in_ch, 3, 3), jnp.float32),
        "conv1_b": 0.05 * jax.random.normal(ks[1], (out_ch,), jnp.float32),
        "conv2_w": 0.1 * jax.random.normal(ks[2], (out_ch, out_ch, 3, 3), jnp.float32),
        "conv2_b": 0.05 * jax.random.normal(ks[3], (out_ch,), jnp.float32),
        "bn1_g": jnp.ones((out_ch,), jnp.float32),
        "bn1_b": jnp.zeros((out_ch,), jnp.float32),
        "bn2_g": jnp.ones((out_ch,), jnp.float32),
        "bn2_b": jnp.zeros((out_ch,), jnp.float32),
    }
    if downsample:
        params.update({
            "sc_w": 0.1 * jax.random.normal(ks[4], (out_ch, in_ch, 1, 1), jnp.float32),
            "sc_b": 0.05 * jax.random.normal(ks[5], (out_ch,), jnp.float32),
            "sc_bn_g": jnp.ones((out_ch,), jnp.float32),
            "sc_bn_b": jnp.zeros((out_ch,), jnp.float32),
        })
    return params


# --------------------------- pure-JAX reference ----------------------------- #
def _ref_conv(x, w, b, stride, pad):
    y = jax.lax.conv_general_dilated(
        x, w, (stride, stride), [(pad, pad), (pad, pad)],
        dimension_numbers=("NCHW", "OIHW", "NCHW"))
    return y + b[None, :, None, None]


def _ref_bn(y, g, b):
    mean = jnp.mean(y, axis=(0, 2, 3), keepdims=True)
    var = jnp.var(y, axis=(0, 2, 3), keepdims=True)          # biased, as in PyTorch train BN
    return (y - mean) / jnp.sqrt(var + EPS) * g[None, :, None, None] + b[None, :, None, None]


def resblock_ref(x, p, downsample):
    stride1 = 2 if downsample else 1
    if downsample:
        sc = _ref_bn(_ref_conv(x, p["sc_w"], p["sc_b"], 2, 0), p["sc_bn_g"], p["sc_bn_b"])
    else:
        sc = x
    h = jax.nn.relu(_ref_bn(_ref_conv(x, p["conv1_w"], p["conv1_b"], stride1, 1),
                            p["bn1_g"], p["bn1_b"]))
    h = jax.nn.relu(_ref_bn(_ref_conv(h, p["conv2_w"], p["conv2_b"], 1, 1),
                            p["bn2_g"], p["bn2_b"]))
    return jax.nn.relu(h + sc)


# ---------------------------------- main ------------------------------------ #
if __name__ == "__main__":
    key = jax.random.PRNGKey(0)
    kx, kp1, kp2 = jax.random.split(key, 3)

    x = jax.random.normal(kx, (2, 4, 16, 16), jnp.float32)

    # case 1: downsample=True, 4 -> 8 channels, spatial 16 -> 8
    p_ds = init_params(kp1, 4, 8, downsample=True)
    ref_ds = resblock_ref(x, p_ds, downsample=True)
    out_ds = jax.block_until_ready(
        resblock_forward(x, p_ds, downsample=True, compute_dtype=jnp.float32))
    assert out_ds.shape == (2, 8, 8, 8)
    assert jnp.allclose(out_ds, ref_ds, atol=5e-4, rtol=5e-4)
    out_ds_bf16 = jax.block_until_ready(
        resblock_forward(x, p_ds, downsample=True, compute_dtype=jnp.bfloat16))
    assert jnp.allclose(out_ds_bf16, ref_ds, atol=1e-1, rtol=1e-1)  # bf16 MXU path

    # case 2: downsample=False, identity shortcut (in == out == 4 channels)
    p_id = init_params(kp2, 4, 4, downsample=False)
    ref_id = resblock_ref(x, p_id, downsample=False)
    out_id = jax.block_until_ready(
        resblock_forward(x, p_id, downsample=False, compute_dtype=jnp.float32))
    assert out_id.shape == (2, 4, 16, 16)
    assert jnp.allclose(out_id, ref_id, atol=5e-4, rtol=5e-4)
    out_id_bf16 = jax.block_until_ready(
        resblock_forward(x, p_id, downsample=False, compute_dtype=jnp.bfloat16))
    assert jnp.allclose(out_id_bf16, ref_id, atol=1e-1, rtol=1e-1)

    print("KERNEL_OK")
</pallas_src>

<mosaic_0001>
module attributes {stable_mosaic.version = 11 : i64} {
  func.func @_conv_stats_kernel(%arg0: i32, %arg1: i32, %arg2: memref<256x128xf32, #tpu.memory_space<vmem>>, %arg3: memref<128x128xf32, #tpu.memory_space<vmem>>, %arg4: memref<256x128xf32, #tpu.memory_space<vmem>>, %arg5: memref<1x8x128xf32, #tpu.memory_space<vmem>>, %arg6: memref<1x8x128xf32, #tpu.memory_space<vmem>>, %arg7: memref<256x128xf32, #tpu.memory_space<vmem>>) attributes {dimension_semantics = [#tpu.dimension_semantics<parallel>, #tpu.dimension_semantics<arbitrary>], iteration_bounds = array<i64: 1, 1>, scalar_prefetch = 0 : i64, scratch_operands = 1 : i64, tpu.core_type = #tpu.core_type<tc>, window_params = [{transform_indices = @transform_0, window_bounds = array<i64: 256, 128>}, {transform_indices = @transform_1, window_bounds = array<i64: 128, 128>}, {transform_indices = @transform_2, window_bounds = array<i64: 256, 128>}, {transform_indices = @transform_3, window_bounds = array<i64: 1, 8, 128>}, {transform_indices = @transform_4, window_bounds = array<i64: 1, 8, 128>}]} {
    %c0_i32 = arith.constant 0 : i32
    %0 = arith.cmpi eq, %arg1, %c0_i32 : i32
    %1 = arith.extui %0 : i1 to i32
    %c0_i32_0 = arith.constant 0 : i32
    %2 = arith.cmpi ne, %1, %c0_i32_0 : i32
    scf.if %2 {
      %cst_10 = arith.constant 0.000000e+00 : f32
      %12 = vector.broadcast %cst_10 : f32 to vector<256x128xf32>
      %c0_11 = arith.constant 0 : index
      %c0_12 = arith.constant 0 : index
      %13 = vector.load %arg7[%c0_11, %c0_12] : memref<256x128xf32, #tpu.memory_space<vmem>>, vector<256x128xf32>
      tpu.vector_store %arg7[%c0_11, %c0_12], %12 {strides = array<i32>} : memref<256x128xf32, #tpu.memory_space<vmem>>, vector<256x128xf32>,
    } else {
    }
    %c0 = arith.constant 0 : index
    %c0_1 = arith.constant 0 : index
    %3 = vector.load %arg7[%c0, %c0_1] : memref<256x128xf32, #tpu.memory_space<vmem>>, vector<256x128xf32>
    %c0_2 = arith.constant 0 : index
    %c0_3 = arith.constant 0 : index
    %4 = vector.load %arg2[%c0_2, %c0_3] : memref<256x128xf32, #tpu.memory_space<vmem>>, vector<256x128xf32>
    %c0_4 = arith.constant 0 : index
    %c0_5 = arith.constant 0 : index
    %5 = vector.load %arg3[%c0_4, %c0_5] : memref<128x128xf32, #tpu.memory_space<vmem>>, vector<128x128xf32>
    %cst = arith.constant dense<0.000000e+00> : vector<256x128xf32>
    %6 = tpu.matmul %4, %5, %cst {dimension_numbers = #tpu.dot_dimension_numbers<[1], [0], [0], [1], [0, 0, 1, 1], [], []>} : vector<256x128xf32>, vector<128x128xf32>, vector<256x128xf32> -> vector<256x128xf32>
    %7 = arith.addf %3, %6 : vector<256x128xf32>
    %c0_6 = arith.constant 0 : index
    %c0_7 = arith.constant 0 : index
    %8 = vector.load %arg7[%c0_6, %c0_7] : memref<256x128xf32, #tpu.memory_space<vmem>>, vector<256x128xf32>
    tpu.vector_store %arg7[%c0_6, %c0_7], %7 {strides = array<i32>} : memref<256x128xf32, #tpu.memory_space<vmem>>, vector<256x128xf32>,
    %c0_i32_8 = arith.constant 0 : i32
    %9 = arith.cmpi eq, %arg1, %c0_i32_8 : i32
    %10 = arith.extui %9 : i1 to i32
    %c0_i32_9 = arith.constant 0 : i32
    %11 = arith.cmpi ne, %10, %c0_i32_9 : i32
    scf.if %11 {
      %c0_10 = arith.constant 0 : index
      %c0_11 = arith.constant 0 : index
      %12 = vector.load %arg7[%c0_10, %c0_11] : memref<256x128xf32, #tpu.memory_space<vmem>>, vector<256x128xf32>
      %c0_12 = arith.constant 0 : index
      %c0_13 = arith.constant 0 : index
      %13 = vector.load %arg4[%c0_12, %c0_13] : memref<256x128xf32, #tpu.memory_space<vmem>>, vector<256x128xf32>
      tpu.vector_store %arg4[%c0_12, %c0_13], %12 {strides = array<i32>} : memref<256x128xf32, #tpu.memory_space<vmem>>, vector<256x128xf32>,
      %14 = vector.shape_cast %12 : vector<256x128xf32> to vector<32x8x128xf32>
      %cst_14 = arith.constant dense<0.000000e+00> : vector<8x128xf32>
      %15 = vector.multi_reduction <add>, %14, %cst_14 [0] : vector<32x8x128xf32> to vector<8x128xf32>
      %c0_15 = arith.constant 0 : index
      %c0_16 = arith.constant 0 : index
      %c0_17 = arith.constant 0 : index
      %16 = vector.load %arg5[%c0_15, %c0_16, %c0_17] : memref<1x8x128xf32, #tpu.memory_space<vmem>>, vector<1x8x128xf32>
      %17 = vector.shape_cast %16 : vector<1x8x128xf32> to vector<8x128xf32>
      %18 = vector.shape_cast %15 : vector<8x128xf32> to vector<1x8x128xf32>
      tpu.vector_store %arg5[%c0_15, %c0_16, %c0_17], %18 {strides = array<i32>} : memref<1x8x128xf32, #tpu.memory_space<vmem>>, vector<1x8x128xf32>,
      %19 = arith.mulf %14, %14 : vector<32x8x128xf32>
      %cst_18 = arith.constant dense<0.000000e+00> : vector<8x128xf32>
      %20 = vector.multi_reduction <add>, %19, %cst_18 [0] : vector<32x8x128xf32> to vector<8x128xf32>
      %c0_19 = arith.constant 0 : index
      %c0_20 = arith.constant 0 : index
      %c0_21 = arith.constant 0 : index
      %21 = vector.load %arg6[%c0_19, %c0_20, %c0_21] : memref<1x8x128xf32, #tpu.memory_space<vmem>>, vector<1x8x128xf32>
      %22 = vector.shape_cast %21 : vector<1x8x128xf32> to vector<8x128xf32>
      %23 = vector.shape_cast %20 : vector<8x128xf32> to vector<1x8x128xf32>
      tpu.vector_store %arg6[%c0_19, %c0_20, %c0_21], %23 {strides = array<i32>} : memref<1x8x128xf32, #tpu.memory_space<vmem>>, vector<1x8x128xf32>,
    } else {
    }
    return
  }
  func.func @transform_0(%arg0: i32, %arg1: i32) -> (i32, i32) {
    %c0_i32 = arith.constant 0 : i32
    return %arg0, %arg1 : i32, i32
  }
  func.func @transform_1(%arg0: i32, %arg1: i32) -> (i32, i32) {
    %c0_i32 = arith.constant 0 : i32
    %c0_i32_0 = arith.constant 0 : i32
    return %arg1, %c0_i32 : i32, i32
  }
  func.func @transform_2(%arg0: i32, %arg1: i32) -> (i32, i32) {
    %c0_i32 = arith.constant 0 : i32
    %c0_i32_0 = arith.constant 0 : i32
    return %arg0, %c0_i32 : i32, i32
  }
  func.func @transform_3(%arg0: i32, %arg1: i32) -> (i32, i32, i32) {
    %c0_i32 = arith.constant 0 : i32
    %c0_i32_0 = arith.constant 0 : i32
    %c0_i32_1 = arith.constant 0 : i32
    return %arg0, %c0_i32, %c0_i32_0 : i32, i32, i32
  }
  func.func @transform_4(%arg0: i32, %arg1: i32) -> (i32, i32, i32) {
    %c0_i32 = arith.constant 0 : i32
    %c0_i32_0 = arith.constant 0 : i32
    %c0_i32_1 = arith.constant 0 : i32
    return %arg0, %c0_i32, %c0_i32_0 : i32, i32, i32
  }
}

module attributes {stable_mosaic.version = 11 : i64} {
  func.func @_bn_act_res_kernel(%arg0: i32, %arg1: memref<256x128xf32, #tpu.memory_space<vmem>>, %arg2: memref<1x128xf32, #tpu.memory_space<vmem>>, %arg3: memref<1x128xf32, #tpu.memory_space<vmem>>, %arg4: memref<256x128xf32, #tpu.memory_space<vmem>>, %arg5: memref<1x128xf32, #tpu.memory_space<vmem>>, %arg6: memref<1x128xf32, #tpu.memory_space<vmem>>, %arg7: memref<256x128xf32, #tpu.memory_space<vmem>>) attributes {dimension_semantics = [#tpu.dimension_semantics<parallel>], iteration_bounds = array<i64: 1>, scalar_prefetch = 0 : i64, scratch_operands = 0 : i64, tpu.core_type = #tpu.core_type<tc>, window_params = [{transform_indices = @transform_0, window_bounds = array<i64: 256, 128>}, {pipeline_mode = #tpu.pipeline_mode<synchronous>, transform_indices = @transform_1, window_bounds = array<i64: 1, 128>}, {pipeline_mode = #tpu.pipeline_mode<synchronous>, transform_indices = @transform_2, window_bounds = array<i64: 1, 128>}, {transform_indices = @transform_3, window_bounds = array<i64: 256, 128>}, {pipeline_mode = #tpu.pipeline_mode<synchronous>, transform_indices = @transform_4, window_bounds = array<i64: 1, 128>}, {pipeline_mode = #tpu.pipeline_mode<synchronous>, transform_indices = @transform_5, window_bounds = array<i64: 1, 128>}, {transform_indices = @transform_6, window_bounds = array<i64: 256, 128>}]} {
    %c0 = arith.constant 0 : index
    %c0_0 = arith.constant 0 : index
    %0 = vector.load %arg1[%c0, %c0_0] : memref<256x128xf32, #tpu.memory_space<vmem>>, vector<256x128xf32>
    %c0_1 = arith.constant 0 : index
    %c0_2 = arith.constant 0 : index
    %1 = vector.load %arg2[%c0_1, %c0_2] : memref<1x128xf32, #tpu.memory_space<vmem>>, vector<1x128xf32>
    %2 = vector.broadcast %1 : vector<1x128xf32> to vector<256x128xf32>
    %3 = arith.mulf %0, %2 : vector<256x128xf32>
    %c0_3 = arith.constant 0 : index
    %c0_4 = arith.constant 0 : index
    %4 = vector.load %arg3[%c0_3, %c0_4] : memref<1x128xf32, #tpu.memory_space<vmem>>, vector<1x128xf32>
    %5 = vector.broadcast %4 : vector<1x128xf32> to vector<256x128xf32>
    %6 = arith.addf %3, %5 : vector<256x128xf32>
    %cst = arith.constant 0.000000e+00 : f32
    %7 = vector.broadcast %cst : f32 to vector<256x128xf32>
    %8 = arith.maximumf %6, %7 : vector<256x128xf32>
    %c0_5 = arith.constant 0 : index
    %c0_6 = arith.constant 0 : index
    %9 = vector.load %arg4[%c0_5, %c0_6] : memref<256x128xf32, #tpu.memory_space<vmem>>, vector<256x128xf32>
    %c0_7 = arith.constant 0 : index
    %c0_8 = arith.constant 0 : index
    %10 = vector.load %arg5[%c0_7, %c0_8] : memref<1x128xf32, #tpu.memory_space<vmem>>, vector<1x128xf32>
    %11 = vector.broadcast %10 : vector<1x128xf32> to vector<256x128xf32>
    %12 = arith.mulf %9, %11 : vector<256x128xf32>
    %c0_9 = arith.constant 0 : index
    %c0_10 = arith.constant 0 : index
    %13 = vector.load %arg6[%c0_9, %c0_10] : memref<1x128xf32, #tpu.memory_space<vmem>>, vector<1x128xf32>
    %14 = vector.broadcast %13 : vector<1x128xf32> to vector<256x128xf32>
    %15 = arith.addf %12, %14 : vector<256x128xf32>
    %16 = arith.addf %8, %15 : vector<256x128xf32>
    %cst_11 = arith.constant 0.000000e+00 : f32
    %17 = vector.broadcast %cst_11 : f32 to vector<256x128xf32>
    %18 = arith.maximumf %16, %17 : vector<256x128xf32>
    %c0_12 = arith.constant 0 : index
    %c0_13 = arith.constant 0 : index
    %19 = vector.load %arg7[%c0_12, %c0_13] : memref<256x128xf32, #tpu.memory_space<vmem>>, vector<256x128xf32>
    tpu.vector_store %arg7[%c0_12, %c0_13], %18 {strides = array<i32>} : memref<256x128xf32, #tpu.memory_space<vmem>>, vector<256x128xf32>,
    return
  }
  func.func @transform_0(%arg0: i32) -> (i32, i32) {
    %c0_i32 = arith.constant 0 : i32
    %c0_i32_0 = arith.constant 0 : i32
    return %arg0, %c0_i32 : i32, i32
  }
  func.func @transform_1(%arg0: i32) -> (i32, i32) {
    %c0_i32 = arith.constant 0 : i32
    %c0_i32_0 = arith.constant 0 : i32
    %c0_i32_1 = arith.constant 0 : i32
    return %c0_i32, %c0_i32_0 : i32, i32
  }
  func.func @transform_2(%arg0: i32) -> (i32, i32) {
    %c0_i32 = arith.constant 0 : i32
    %c0_i32_0 = arith.constant 0 : i32
    %c0_i32_1 = arith.constant 0 : i32
    return %c0_i32, %c0_i32_0 : i32, i32
  }
  func.func @transform_3(%arg0: i32) -> (i32, i32) {
    %c0_i32 = arith.constant 0 : i32
    %c0_i32_0 = arith.constant 0 : i32
    return %arg0, %c0_i32 : i32, i32
  }
  func.func @transform_4(%arg0: i32) -> (i32, i32) {
    %c0_i32 = arith.constant 0 : i32
    %c0_i32_0 = arith.constant 0 : i32
    %c0_i32_1 = arith.constant 0 : i32
    return %c0_i32, %c0_i32_0 : i32, i32
  }
  func.func @transform_5(%arg0: i32) -> (i32, i32) {
    %c0_i32 = arith.constant 0 : i32
    %c0_i32_0 = arith.constant 0 : i32
    %c0_i32_1 = arith.constant 0 : i32
    return %c0_i32, %c0_i32_0 : i32, i32
  }
  func.func @transform_6(%arg0: i32) -> (i32, i32) {
    %c0_i32 = arith.constant 0 : i32
    %c0_i32_0 = arith.constant 0 : i32
    return %arg0, %c0_i32 : i32, i32
  }
}

</mosaic_0001>

<llo_original>
// kernel: resblock_forward.7
$region0: #{resblock_forward.7}
  #allocation0 [shape = 'u32[]', space=smem, size = 0x4, offset = 0x4, fixed_abs, tag = 'smem constant byte address 0x4 - core index']
  #allocation1 [shape = 'u32[72,128]{1,0:T(1,128)}', space=vmem, size = 0x9000, scoped, tag = 'internal scratch']
  %s0 = inlined_call_operand.vmem [shape: f32[256,128], index: 0, kind: input, shape index: {}]
  %s1 = inlined_call_operand.vmem [shape: f32[1,128], index: 1, kind: input, shape index: {}]
  %s2 = inlined_call_operand.vmem [shape: f32[1,128], index: 2, kind: input, shape index: {}]
  %s3 = inlined_call_operand.vmem [shape: f32[256,128], index: 3, kind: input, shape index: {}]
  %s4 = inlined_call_operand.vmem [shape: f32[1,128], index: 4, kind: input, shape index: {}]
  %s5 = inlined_call_operand.vmem [shape: f32[1,128], index: 5, kind: input, shape index: {}]
  %s6 = inlined_call_operand.vmem [shape: f32[256,128], index: 6, kind: output, shape index: {}]
  %s7 = sld [smem:[#allocation0]]
  $region34: #{resblock_forward.7} parent=0
    _
  %s9 = ssub.s32 1, %s7
  %s10 = scalar_select 0, %s9, %s7
  // Predicated region
  $region2: #{resblock_forward.7} parent=0 // pred_check
    _
  $region3: #{resblock_forward.7} parent=0 // pred_check_branch
    %12 = sbr.rel (0) target = $region5
  $region4: #{resblock_forward.7} parent=0 // pred_region
    _
  $region5: #{resblock_forward.7} parent=0 // pred_fallthru
    _
  // Predicated region
  $region6: #{resblock_forward.7} parent=0 // pred_check
    _
  $region7: #{resblock_forward.7} parent=0 // pred_check_branch
    %14 = sbr.rel (0) target = $region9
  $region8: #{resblock_forward.7} parent=0 // pred_region
    _
  $region9: #{resblock_forward.7} parent=0 // pred_fallthru
    _
  // Predicated region
  $region10: #{resblock_forward.7} parent=0 // pred_check
    _
  $region11: #{resblock_forward.7} parent=0 // pred_check_branch
    %16 = sbr.rel (0) target = $region13
  $region12: #{resblock_forward.7} parent=0 // pred_region
    _
  $region13: #{resblock_forward.7} parent=0 // pred_fallthru
    _
  // Predicated region
  $region14: #{resblock_forward.7} parent=0 // pred_check
    _
  $region15: #{resblock_forward.7} parent=0 // pred_check_branch
    %18 = sbr.rel (0) target = $region17
  $region16: #{resblock_forward.7} parent=0 // pred_region
    _
  $region17: #{resblock_forward.7} parent=0 // pred_fallthru
    _
  // Predicated region
  $region18: #{resblock_forward.7} parent=0 // pred_check
    _
  $region19: #{resblock_forward.7} parent=0 // pred_check_branch
    %20 = sbr.rel (0) target = $region21
  $region20: #{resblock_forward.7} parent=0 // pred_region
    _
  $region21: #{resblock_forward.7} parent=0 // pred_fallthru
    _
  // Predicated region
  $region22: #{resblock_forward.7} parent=0 // pred_check
    _
  $region23: #{resblock_forward.7} parent=0 // pred_check_branch
    %22 = sbr.rel (0) target = $region25
  $region24: #{resblock_forward.7} parent=0 // pred_region
    _
  $region25: #{resblock_forward.7} parent=0 // pred_fallthru
    _
  %v23 = vld [vmem:[%s0] sm:$0xff]
  %v24 = vld [vmem:[%s0 + $0x8] sm:$0xff]
  %v25 = vld [vmem:[%s0 + $0x10] sm:$0xff]
  %v26 = vld [vmem:[%s0 + $0x18] sm:$0xff]
  %v27 = vld [vmem:[%s0 + $0x20] sm:$0xff]
  %v28 = vld [vmem:[%s0 + $0x28] sm:$0xff]
  %v29 = vld [vmem:[%s0 + $0x30] sm:$0xff]
  %v30 = vld [vmem:[%s0 + $0x38] sm:$0xff]
  %v31 = vld [vmem:[%s0 + $0x40] sm:$0xff]
  %v32 = vld [vmem:[%s0 + $0x48] sm:$0xff]
  %v33 = vld [vmem:[%s0 + $0x50] sm:$0xff]
  %v34 = vld [vmem:[%s0 + $0x58] sm:$0xff]
  %v35 = vld [vmem:[%s0 + $0x60] sm:$0xff]
  %v36 = vld [vmem:[%s0 + $0x68] sm:$0xff]
  %v37 = vld [vmem:[%s0 + $0x70] sm:$0xff]
  %v38 = vld [vmem:[%s0 + $0x78] sm:$0xff]
  %v39 = vld [vmem:[%s0 + $0x80] sm:$0xff]
  %v40 = vld [vmem:[%s0 + $0x88] sm:$0xff]
  %v41 = vld [vmem:[%s0 + $0x90] sm:$0xff]
  %v42 = vld [vmem:[%s0 + $0x98] sm:$0xff]
  %v43 = vld [vmem:[%s0 + $0xa0] sm:$0xff]
  %v44 = vld [vmem:[%s0 + $0xa8] sm:$0xff]
  %v45 = vld [vmem:[%s0 + $0xb0] sm:$0xff]
  %v46 = vld [vmem:[%s0 + $0xb8] sm:$0xff]
  %v47 = vld [vmem:[%s0 + $0xc0] sm:$0xff]
  %v48 = vld [vmem:[%s0 + $0xc8] sm:$0xff]
  %v49 = vld [vmem:[%s0 + $0xd0] sm:$0xff]
  %v50 = vld [vmem:[%s0 + $0xd8] sm:$0xff]
  %v51 = vld [vmem:[%s0 + $0xe0] sm:$0xff]
  %v52 = vld [vmem:[%s0 + $0xe8] sm:$0xff]
  %v53 = vld [vmem:[%s0 + $0xf0] sm:$0xff]
  %v54 = vld [vmem:[%s0 + $0xf8] sm:$0xff]
  %v55 = vld [vmem:[%s1] sm:$0x1]
  %v57 = vperm.slane %v55, 0
  %v59 = vmul.f32 %v23, %v57
  %v60 = vmul.f32 %v24, %v57
  %v61 = vmul.f32 %v25, %v57
  %v62 = vmul.f32 %v26, %v57
  %v63 = vmul.f32 %v27, %v57
  %v64 = vmul.f32 %v28, %v57
  %v65 = vmul.f32 %v29, %v57
  %v66 = vmul.f32 %v30, %v57
  %v67 = vmul.f32 %v31, %v57
  %v68 = vmul.f32 %v32, %v57
  %v69 = vmul.f32 %v33, %v57
  %v70 = vmul.f32 %v34, %v57
  %v71 = vmul.f32 %v35, %v57
  %v72 = vmul.f32 %v36, %v57
  %v73 = vmul.f32 %v37, %v57
  %v74 = vmul.f32 %v38, %v57
  %v75 = vmul.f32 %v39, %v57
  %v76 = vmul.f32 %v40, %v57
  %v77 = vmul.f32 %v41, %v57
  %v78 = vmul.f32 %v42, %v57
  %v79 = vmul.f32 %v43, %v57
  %v80 = vmul.f32 %v44, %v57
  %v81 = vmul.f32 %v45, %v57
  %v82 = vmul.f32 %v46, %v57
  %v83 = vmul.f32 %v47, %v57
  %v84 = vmul.f32 %v48, %v57
  %v85 = vmul.f32 %v49, %v57
  %v86 = vmul.f32 %v50, %v57
  %v87 = vmul.f32 %v51, %v57
  %v88 = vmul.f32 %v52, %v57
  %v89 = vmul.f32 %v53, %v57
  %v90 = vmul.f32 %v54, %v57
  %v91 = vld [vmem:[%s2] sm:$0x1]
  %v93 = vperm.slane %v91, 0
  %v95 = vadd.f32 %v59, %v93
  %v96 = vadd.f32 %v60, %v93
  %v97 = vadd.f32 %v61, %v93
  %v98 = vadd.f32 %v62, %v93
  %v99 = vadd.f32 %v63, %v93
  %v100 = vadd.f32 %v64, %v93
  %v101 = vadd.f32 %v65, %v93
  %v102 = vadd.f32 %v66, %v93
  %v103 = vadd.f32 %v67, %v93
  %v104 = vadd.f32 %v68, %v93
  %v105 = vadd.f32 %v69, %v93
  %v106 = vadd.f32 %v70, %v93
  %v107 = vadd.f32 %v71, %v93
  %v108 = vadd.f32 %v72, %v93
  %v109 = vadd.f32 %v73, %v93
  %v110 = vadd.f32 %v74, %v93
  %v111 = vadd.f32 %v75, %v93
  %v112 = vadd.f32 %v76, %v93
  %v113 = vadd.f32 %v77, %v93
  %v114 = vadd.f32 %v78, %v93
  %v115 = vadd.f32 %v79, %v93
  %v116 = vadd.f32 %v80, %v93
  %v117 = vadd.f32 %v81, %v93
  %v118 = vadd.f32 %v82, %v93
  %v119 = vadd.f32 %v83, %v93
  %v120 = vadd.f32 %v84, %v93
  %v121 = vadd.f32 %v85, %v93
  %v122 = vadd.f32 %v86, %v93
  %v123 = vadd.f32 %v87, %v93
  %v124 = vadd.f32 %v88, %v93
  %v125 = vadd.f32 %v89, %v93
  %v126 = vadd.f32 %v90, %v93
  %v127 = vmax.f32 %v95, 0.0
  %v128 = vmax.f32 %v96, 0.0
  %v129 = vmax.f32 %v97, 0.0
  %v130 = vmax.f32 %v98, 0.0
  %v131 = vmax.f32 %v99, 0.0
  %v132 = vmax.f32 %v100, 0.0
  %v133 = vmax.f32 %v101, 0.0
  %v134 = vmax.f32 %v102, 0.0
  %v135 = vmax.f32 %v103, 0.0
  %v136 = vmax.f32 %v104, 0.0
  %v137 = vmax.f32 %v105, 0.0
  %v138 = vmax.f32 %v106, 0.0
  %v139 = vmax.f32 %v107, 0.0
  %v140 = vmax.f32 %v108, 0.0
  %v141 = vmax.f32 %v109, 0.0
  %v142 = vmax.f32 %v110, 0.0
  %v143 = vmax.f32 %v111, 0.0
  %v144 = vmax.f32 %v112, 0.0
  %v145 = vmax.f32 %v113, 0.0
  %v146 = vmax.f32 %v114, 0.0
  %v147 = vmax.f32 %v115, 0.0
  %v148 = vmax.f32 %v116, 0.0
  %v149 = vmax.f32 %v117, 0.0
  %v150 = vmax.f32 %v118, 0.0
  %v151 = vmax.f32 %v119, 0.0
  %v152 = vmax.f32 %v120, 0.0
  %v153 = vmax.f32 %v121, 0.0
  %v154 = vmax.f32 %v122, 0.0
  %v155 = vmax.f32 %v123, 0.0
  %v156 = vmax.f32 %v124, 0.0
  %v157 = vmax.f32 %v125, 0.0
  %v158 = vmax.f32 %v126, 0.0
  %v159 = vld [vmem:[%s3] sm:$0xff]
  %v160 = vld [vmem:[%s3 + $0x8] sm:$0xff]
  %v161 = vld [vmem:[%s3 + $0x10] sm:$0xff]
  %v162 = vld [vmem:[%s3 + $0x18] sm:$0xff]
  %v163 = vld [vmem:[%s3 + $0x20] sm:$0xff]
  %v164 = vld [vmem:[%s3 + $0x28] sm:$0xff]
  %v165 = vld [vmem:[%s3 + $0x30] sm:$0xff]
  %v166 = vld [vmem:[%s3 + $0x38] sm:$0xff]
  %v167 = vld [vmem:[%s3 + $0x40] sm:$0xff]
  %v168 = vld [vmem:[%s3 + $0x48] sm:$0xff]
  %v169 = vld [vmem:[%s3 + $0x50] sm:$0xff]
  %v170 = vld [vmem:[%s3 + $0x58] sm:$0xff]
  %v171 = vld [vmem:[%s3 + $0x60] sm:$0xff]
  %v172 = vld [vmem:[%s3 + $0x68] sm:$0xff]
  %v173 = vld [vmem:[%s3 + $0x70] sm:$0xff]
  %v174 = vld [vmem:[%s3 + $0x78] sm:$0xff]
  %v175 = vld [vmem:[%s3 + $0x80] sm:$0xff]
  %v176 = vld [vmem:[%s3 + $0x88] sm:$0xff]
  %v177 = vld [vmem:[%s3 + $0x90] sm:$0xff]
  %v178 = vld [vmem:[%s3 + $0x98] sm:$0xff]
  %v179 = vld [vmem:[%s3 + $0xa0] sm:$0xff]
  %v180 = vld [vmem:[%s3 + $0xa8] sm:$0xff]
  %v181 = vld [vmem:[%s3 + $0xb0] sm:$0xff]
  %v182 = vld [vmem:[%s3 + $0xb8] sm:$0xff]
  %v183 = vld [vmem:[%s3 + $0xc0] sm:$0xff]
  %v184 = vld [vmem:[%s3 + $0xc8] sm:$0xff]
  %v185 = vld [vmem:[%s3 + $0xd0] sm:$0xff]
  %v186 = vld [vmem:[%s3 + $0xd8] sm:$0xff]
  %v187 = vld [vmem:[%s3 + $0xe0] sm:$0xff]
  %v188 = vld [vmem:[%s3 + $0xe8] sm:$0xff]
  %v189 = vld [vmem:[%s3 + $0xf0] sm:$0xff]
  %v190 = vld [vmem:[%s3 + $0xf8] sm:$0xff]
  %v191 = vld [vmem:[%s4] sm:$0x1]
  %v193 = vperm.slane %v191, 0
  %v195 = vmul.f32 %v159, %v193
  %v196 = vmul.f32 %v160, %v193
  %v197 = vmul.f32 %v161, %v193
  %v198 = vmul.f32 %v162, %v193
  %v199 = vmul.f32 %v163, %v193
  %v200 = vmul.f32 %v164, %v193
  %v201 = vmul.f32 %v165, %v193
  %v202 = vmul.f32 %v166, %v193
  %v203 = vmul.f32 %v167, %v193
  %v204 = vmul.f32 %v168, %v193
  %v205 = vmul.f32 %v169, %v193
  %v206 = vmul.f32 %v170, %v193
  %v207 = vmul.f32 %v171, %v193
  %v208 = vmul.f32 %v172, %v193
  %v209 = vmul.f32 %v173, %v193
  %v210 = vmul.f32 %v174, %v193
  %v211 = vmul.f32 %v175, %v193
  %v212 = vmul.f32 %v176, %v193
  %v213 = vmul.f32 %v177, %v193
  %v214 = vmul.f32 %v178, %v193
  %v215 = vmul.f32 %v179, %v193
  %v216 = vmul.f32 %v180, %v193
  %v217 = vmul.f32 %v181, %v193
  %v218 = vmul.f32 %v182, %v193
  %v219 = vmul.f32 %v183, %v193
  %v220 = vmul.f32 %v184, %v193
  %v221 = vmul.f32 %v185, %v193
  %v222 = vmul.f32 %v186, %v193
  %v223 = vmul.f32 %v187, %v193
  %v224 = vmul.f32 %v188, %v193
  %v225 = vmul.f32 %v189, %v193
  %v226 = vmul.f32 %v190, %v193
  %v227 = vld [vmem:[%s5] sm:$0x1]
  %v229 = vperm.slane %v227, 0
  %v231 = vadd.f32 %v195, %v229
  %v232 = vadd.f32 %v196, %v229
  %v233 = vadd.f32 %v197, %v229
  %v234 = vadd.f32 %v198, %v229
  %v235 = vadd.f32 %v199, %v229
  %v236 = vadd.f32 %v200, %v229
  %v237 = vadd.f32 %v201, %v229
  %v238 = vadd.f32 %v202, %v229
  %v239 = vadd.f32 %v203, %v229
  %v240 = vadd.f32 %v204, %v229
  %v241 = vadd.f32 %v205, %v229
  %v242 = vadd.f32 %v206, %v229
  %v243 = vadd.f32 %v207, %v229
  %v244 = vadd.f32 %v208, %v229
  %v245 = vadd.f32 %v209, %v229
  %v246 = vadd.f32 %v210, %v229
  %v247 = vadd.f32 %v211, %v229
  %v248 = vadd.f32 %v212, %v229
  %v249 = vadd.f32 %v213, %v229
  %v250 = vadd.f32 %v214, %v229
  %v251 = vadd.f32 %v215, %v229
  %v252 = vadd.f32 %v216, %v229
  %v253 = vadd.f32 %v217, %v229
  %v254 = vadd.f32 %v218, %v229
  %v255 = vadd.f32 %v219, %v229
  %v256 = vadd.f32 %v220, %v229
  %v257 = vadd.f32 %v221, %v229
  %v258 = vadd.f32 %v222, %v229
  %v259 = vadd.f32 %v223, %v229
  %v260 = vadd.f32 %v224, %v229
  %v261 = vadd.f32 %v225, %v229
  %v262 = vadd.f32 %v226, %v229
  %v263 = vadd.f32 %v127, %v231
  %v264 = vadd.f32 %v128, %v232
  %v265 = vadd.f32 %v129, %v233
  %v266 = vadd.f32 %v130, %v234
  %v267 = vadd.f32 %v131, %v235
  %v268 = vadd.f32 %v132, %v236
  %v269 = vadd.f32 %v133, %v237
  %v270 = vadd.f32 %v134, %v238
  %v271 = vadd.f32 %v135, %v239
  %v272 = vadd.f32 %v136, %v240
  %v273 = vadd.f32 %v137, %v241
  %v274 = vadd.f32 %v138, %v242
  %v275 = vadd.f32 %v139, %v243
  %v276 = vadd.f32 %v140, %v244
  %v277 = vadd.f32 %v141, %v245
  %v278 = vadd.f32 %v142, %v246
  %v279 = vadd.f32 %v143, %v247
  %v280 = vadd.f32 %v144, %v248
  %v281 = vadd.f32 %v145, %v249
  %v282 = vadd.f32 %v146, %v250
  %v283 = vadd.f32 %v147, %v251
  %v284 = vadd.f32 %v148, %v252
  %v285 = vadd.f32 %v149, %v253
  %v286 = vadd.f32 %v150, %v254
  %v287 = vadd.f32 %v151, %v255
  %v288 = vadd.f32 %v152, %v256
  %v289 = vadd.f32 %v153, %v257
  %v290 = vadd.f32 %v154, %v258
  %v291 = vadd.f32 %v155, %v259
  %v292 = vadd.f32 %v156, %v260
  %v293 = vadd.f32 %v157, %v261
  %v294 = vadd.f32 %v158, %v262
  %v295 = vmax.f32 %v263, 0.0
  %v296 = vmax.f32 %v264, 0.0
  %v297 = vmax.f32 %v265, 0.0
  %v298 = vmax.f32 %v266, 0.0
  %v299 = vmax.f32 %v267, 0.0
  %v300 = vmax.f32 %v268, 0.0
  %v301 = vmax.f32 %v269, 0.0
  %v302 = vmax.f32 %v270, 0.0
  %v303 = vmax.f32 %v271, 0.0
  %v304 = vmax.f32 %v272, 0.0
  %v305 = vmax.f32 %v273, 0.0
  %v306 = vmax.f32 %v274, 0.0
  %v307 = vmax.f32 %v275, 0.0
  %v308 = vmax.f32 %v276, 0.0
  %v309 = vmax.f32 %v277, 0.0
  %v310 = vmax.f32 %v278, 0.0
  %v311 = vmax.f32 %v279, 0.0
  %v312 = vmax.f32 %v280, 0.0
  %v313 = vmax.f32 %v281, 0.0
  %v314 = vmax.f32 %v282, 0.0
  %v315 = vmax.f32 %v283, 0.0
  %v316 = vmax.f32 %v284, 0.0
  %v317 = vmax.f32 %v285, 0.0
  %v318 = vmax.f32 %v286, 0.0
  %v319 = vmax.f32 %v287, 0.0
  %v320 = vmax.f32 %v288, 0.0
  %v321 = vmax.f32 %v289, 0.0
  %v322 = vmax.f32 %v290, 0.0
  %v323 = vmax.f32 %v291, 0.0
  %v324 = vmax.f32 %v292, 0.0
  %v325 = vmax.f32 %v293, 0.0
  %v326 = vmax.f32 %v294, 0.0
  %327 = vst [vmem:[%s6] sm:$0xff] %v295
  %328 = vst [vmem:[%s6 + $0x8] sm:$0xff] %v296
  %329 = vst [vmem:[%s6 + $0x10] sm:$0xff] %v297
  %330 = vst [vmem:[%s6 + $0x18] sm:$0xff] %v298
  %331 = vst [vmem:[%s6 + $0x20] sm:$0xff] %v299
  %332 = vst [vmem:[%s6 + $0x28] sm:$0xff] %v300
  %333 = vst [vmem:[%s6 + $0x30] sm:$0xff] %v301
  %334 = vst [vmem:[%s6 + $0x38] sm:$0xff] %v302
  %335 = vst [vmem:[%s6 + $0x40] sm:$0xff] %v303
  %336 = vst [vmem:[%s6 + $0x48] sm:$0xff] %v304
  %337 = vst [vmem:[%s6 + $0x50] sm:$0xff] %v305
  %338 = vst [vmem:[%s6 + $0x58] sm:$0xff] %v306
  %339 = vst [vmem:[%s6 + $0x60] sm:$0xff] %v307
  %340 = vst [vmem:[%s6 + $0x68] sm:$0xff] %v308
  %341 = vst [vmem:[%s6 + $0x70] sm:$0xff] %v309
  %342 = vst [vmem:[%s6 + $0x78] sm:$0xff] %v310
  %343 = vst [vmem:[%s6 + $0x80] sm:$0xff] %v311
  %344 = vst [vmem:[%s6 + $0x88] sm:$0xff] %v312
  %345 = vst [vmem:[%s6 + $0x90] sm:$0xff] %v313
  %346 = vst [vmem:[%s6 + $0x98] sm:$0xff] %v314
  %347 = vst [vmem:[%s6 + $0xa0] sm:$0xff] %v315
  %348 = vst [vmem:[%s6 + $0xa8] sm:$0xff] %v316
  %349 = vst [vmem:[%s6 + $0xb0] sm:$0xff] %v317
  %350 = vst [vmem:[%s6 + $0xb8] sm:$0xff] %v318
  %351 = vst [vmem:[%s6 + $0xc0] sm:$0xff] %v319
  %352 = vst [vmem:[%s6 + $0xc8] sm:$0xff] %v320
  %353 = vst [vmem:[%s6 + $0xd0] sm:$0xff] %v321
  %354 = vst [vmem:[%s6 + $0xd8] sm:$0xff] %v322
  %355 = vst [vmem:[%s6 + $0xe0] sm:$0xff] %v323
  %356 = vst [vmem:[%s6 + $0xe8] sm:$0xff] %v324
  %357 = vst [vmem:[%s6 + $0xf0] sm:$0xff] %v325
  %358 = vst [vmem:[%s6 + $0xf8] sm:$0xff] %v326
  // Predicated region
  $region26: #{resblock_forward.7} parent=0 // pred_check
    _
  $region27: #{resblock_forward.7} parent=0 // pred_check_branch
    %360 = sbr.rel (0) target = $region29
  $region28: #{resblock_forward.7} parent=0 // pred_region
    _
  $region29: #{resblock_forward.7} parent=0 // pred_fallthru
    _
  // Predicated region
  $region30: #{resblock_forward.7} parent=0 // pred_check
    _
  $region31: #{resblock_forward.7} parent=0 // pred_check_branch
    %362 = sbr.rel (0) target = $region33
  $region32: #{resblock_forward.7} parent=0 // pred_region
    _
  $region33: #{resblock_forward.7} parent=0 // pred_fallthru
    _

// kernel: resblock_forward.4
$region0: #{resblock_forward.4}
  #allocation0 [shape = 'u32[]', space=smem, size = 0x4, offset = 0x4, fixed_abs, tag = 'smem constant byte address 0x4 - core index']
  #allocation1 [shape = 'u32[72,128]{1,0:T(1,128)}', space=vmem, size = 0x9000, scoped, tag = 'internal scratch']
  #allocation2 [shape = 'f32[256,128]{1,0:T(8,128)}', space=vmem, size = 0x20000, scoped, tag = 'scratch operand']
  %s0 = inlined_call_operand.vmem [shape: f32[256,128], index: 0, kind: input, shape index: {}]
  %s1 = inlined_call_operand.vmem [shape: f32[128,128], index: 1, kind: input, shape index: {}]
  %s2 = inlined_call_operand.vmem [shape: f32[256,128], index: 2, kind: output, shape index: {0}]
  %s3 = inlined_call_operand.vmem [shape: f32[1,8,128], index: 3, kind: output, shape index: {1}]
  %s4 = inlined_call_operand.vmem [shape: f32[1,8,128], index: 4, kind: output, shape index: {2}]
  %5 = xla_tuple %s2, %s3, %s4
  %s6 = sld [smem:[#allocation0]]
  $region42: #{resblock_forward.4} parent=0
    _
  %s8 = ssub.s32 1, %s6
  %s9 = scalar_select 0, %s8, %s6
  // Predicated region
  $region2: #{resblock_forward.4} parent=0 // pred_check
    _
  $region3: #{resblock_forward.4} parent=0 // pred_check_branch
    %11 = sbr.rel (0) target = $region5
  $region4: #{resblock_forward.4} parent=0 // pred_region
    _
  $region5: #{resblock_forward.4} parent=0 // pred_fallthru
    _
  // Predicated region
  $region6: #{resblock_forward.4} parent=0 // pred_check
    _
  $region7: #{resblock_forward.4} parent=0 // pred_check_branch
    %13 = sbr.rel (0) target = $region9
  $region8: #{resblock_forward.4} parent=0 // pred_region
    _
  $region9: #{resblock_forward.4} parent=0 // pred_fallthru
    _
  %p14 = scmp.eq.s32.totalorder 0, 0
  // Predicated region
  $region10: #{resblock_forward.4} parent=0 // pred_check
    %p15 = pneg %p14
  $region11: #{resblock_forward.4} parent=0 // pred_check_branch
    %17 = sbr.rel (%p15) target = $region13
  $region12: #{resblock_forward.4} parent=0 // pred_region
    %18 = vst [vmem:[#allocation2] sm:$0xff] 0.0
    %19 = vst [vmem:[#allocation2 + $0x8] sm:$0xff] 0.0
    %20 = vst [vmem:[#allocation2 + $0x10] sm:$0xff] 0.0
    %21 = vst [vmem:[#allocation2 + $0x18] sm:$0xff] 0.0
    %22 = vst [vmem:[#allocation2 + $0x20] sm:$0xff] 0.0
    %23 = vst [vmem:[#allocation2 + $0x28] sm:$0xff] 0.0
    %24 = vst [vmem:[#allocation2 + $0x30] sm:$0xff] 0.0
    %25 = vst [vmem:[#allocation2 + $0x38] sm:$0xff] 0.0
    %26 = vst [vmem:[#allocation2 + $0x40] sm:$0xff] 0.0
    %27 = vst [vmem:[#allocation2 + $0x48] sm:$0xff] 0.0
    %28 = vst [vmem:[#allocation2 + $0x50] sm:$0xff] 0.0
    %29 = vst [vmem:[#allocation2 + $0x58] sm:$0xff] 0.0
    %30 = vst [vmem:[#allocation2 + $0x60] sm:$0xff] 0.0
    %31 = vst [vmem:[#allocation2 + $0x68] sm:$0xff] 0.0
    %32 = vst [vmem:[#allocation2 + $0x70] sm:$0xff] 0.0
    %33 = vst [vmem:[#allocation2 + $0x78] sm:$0xff] 0.0
    %34 = vst [vmem:[#allocation2 + $0x80] sm:$0xff] 0.0
    %35 = vst [vmem:[#allocation2 + $0x88] sm:$0xff] 0.0
    %36 = vst [vmem:[#allocation2 + $0x90] sm:$0xff] 0.0
    %37 = vst [vmem:[#allocation2 + $0x98] sm:$0xff] 0.0
    %38 = vst [vmem:[#allocation2 + $0xa0] sm:$0xff] 0.0
    %39 = vst [vmem:[#allocation2 + $0xa8] sm:$0xff] 0.0
    %40 = vst [vmem:[#allocation2 + $0xb0] sm:$0xff] 0.0
    %41 = vst [vmem:[#allocation2 + $0xb8] sm:$0xff] 0.0
    %42 = vst [vmem:[#allocation2 + $0xc0] sm:$0xff] 0.0
    %43 = vst [vmem:[#allocation2 + $0xc8] sm:$0xff] 0.0
    %44 = vst [vmem:[#allocation2 + $0xd0] sm:$0xff] 0.0
    %45 = vst [vmem:[#allocation2 + $0xd8] sm:$0xff] 0.0
    %46 = vst [vmem:[#allocation2 + $0xe0] sm:$0xff] 0.0
    %47 = vst [vmem:[#allocation2 + $0xe8] sm:$0xff] 0.0
    %48 = vst [vmem:[#allocation2 + $0xf0] sm:$0xff] 0.0
    %49 = vst [vmem:[#allocation2 + $0xf8] sm:$0xff] 0.0
  $region13: #{resblock_forward.4} parent=0 // pred_fallthru
    _
  %v50 = vld [vmem:[#allocation2] sm:$0xff]
  %v51 = vld [vmem:[#allocation2 + $0x8] sm:$0xff]
  %v52 = vld [vmem:[#allocation2 + $0x10] sm:$0xff]
  %v53 = vld [vmem:[#allocation2 + $0x18] sm:$0xff]
  %v54 = vld [vmem:[#allocation2 + $0x20] sm:$0xff]
  %v55 = vld [vmem:[#allocation2 + $0x28] sm:$0xff]
  %v56 = vld [vmem:[#allocation2 + $0x30] sm:$0xff]
  %v57 = vld [vmem:[#allocation2 + $0x38] sm:$0xff]
  %v58 = vld [vmem:[#allocation2 + $0x40] sm:$0xff]
  %v59 = vld [vmem:[#allocation2 + $0x48] sm:$0xff]
  %v60 = vld [vmem:[#allocation2 + $0x50] sm:$0xff]
  %v61 = vld [vmem:[#allocation2 + $0x58] sm:$0xff]
  %v62 = vld [vmem:[#allocation2 + $0x60] sm:$0xff]
  %v63 = vld [vmem:[#allocation2 + $0x68] sm:$0xff]
  %v64 = vld [vmem:[#allocation2 + $0x70] sm:$0xff]
  %v65 = vld [vmem:[#allocation2 + $0x78] sm:$0xff]
  %v66 = vld [vmem:[#allocation2 + $0x80] sm:$0xff]
  %v67 = vld [vmem:[#allocation2 + $0x88] sm:$0xff]
  %v68 = vld [vmem:[#allocation2 + $0x90] sm:$0xff]
  %v69 = vld [vmem:[#allocation2 + $0x98] sm:$0xff]
  %v70 = vld [vmem:[#allocation2 + $0xa0] sm:$0xff]
  %v71 = vld [vmem:[#allocation2 + $0xa8] sm:$0xff]
  %v72 = vld [vmem:[#allocation2 + $0xb0] sm:$0xff]
  %v73 = vld [vmem:[#allocation2 + $0xb8] sm:$0xff]
  %v74 = vld [vmem:[#allocation2 + $0xc0] sm:$0xff]
  %v75 = vld [vmem:[#allocation2 + $0xc8] sm:$0xff]
  %v76 = vld [vmem:[#allocation2 + $0xd0] sm:$0xff]
  %v77 = vld [vmem:[#allocation2 + $0xd8] sm:$0xff]
  %v78 = vld [vmem:[#allocation2 + $0xe0] sm:$0xff]
  %v79 = vld [vmem:[#allocation2 + $0xe8] sm:$0xff]
  %v80 = vld [vmem:[#allocation2 + $0xf0] sm:$0xff]
  %v81 = vld [vmem:[#allocation2 + $0xf8] sm:$0xff]
  %v82 = vld [vmem:[%s0] sm:$0xff]
  %v83 = vld [vmem:[%s0 + $0x8] sm:$0xff]
  %v84 = vld [vmem:[%s0 + $0x10] sm:$0xff]
  %v85 = vld [vmem:[%s0 + $0x18] sm:$0xff]
  %v86 = vld [vmem:[%s0 + $0x20] sm:$0xff]
  %v87 = vld [vmem:[%s0 + $0x28] sm:$0xff]
  %v88 = vld [vmem:[%s0 + $0x30] sm:$0xff]
  %v89 = vld [vmem:[%s0 + $0x38] sm:$0xff]
  %v90 = vld [vmem:[%s0 + $0x40] sm:$0xff]
  %v91 = vld [vmem:[%s0 + $0x48] sm:$0xff]
  %v92 = vld [vmem:[%s0 + $0x50] sm:$0xff]
  %v93 = vld [vmem:[%s0 + $0x58] sm:$0xff]
  %v94 = vld [vmem:[%s0 + $0x60] sm:$0xff]
  %v95 = vld [vmem:[%s0 + $0x68] sm:$0xff]
  %v96 = vld [vmem:[%s0 + $0x70] sm:$0xff]
  %v97 = vld [vmem:[%s0 + $0x78] sm:$0xff]
  %v98 = vld [vmem:[%s0 + $0x80] sm:$0xff]
  %v99 = vld [vmem:[%s0 + $0x88] sm:$0xff]
  %v100 = vld [vmem:[%s0 + $0x90] sm:$0xff]
  %v101 = vld [vmem:[%s0 + $0x98] sm:$0xff]
  %v102 = vld [vmem:[%s0 + $0xa0] sm:$0xff]
  %v103 = vld [vmem:[%s0 + $0xa8] sm:$0xff]
  %v104 = vld [vmem:[%s0 + $0xb0] sm:$0xff]
  %v105 = vld [vmem:[%s0 + $0xb8] sm:$0xff]
  %v106 = vld [vmem:[%s0 + $0xc0] sm:$0xff]
  %v107 = vld [vmem:[%s0 + $0xc8] sm:$0xff]
  %v108 = vld [vmem:[%s0 + $0xd0] sm:$0xff]
  %v109 = vld [vmem:[%s0 + $0xd8] sm:$0xff]
  %v110 = vld [vmem:[%s0 + $0xe0] sm:$0xff]
  %v111 = vld [vmem:[%s0 + $0xe8] sm:$0xff]
  %v112 = vld [vmem:[%s0 + $0xf0] sm:$0xff]
  %v113 = vld [vmem:[%s0 + $0xf8] sm:$0xff]
  %v114 = vld [vmem:[%s1] sm:$0xff]
  %v115 = vld [vmem:[%s1 + $0x8] sm:$0xff]
  %v116 = vld [vmem:[%s1 + $0x10] sm:$0xff]
  %v117 = vld [vmem:[%s1 + $0x18] sm:$0xff]
  %v118 = vld [vmem:[%s1 + $0x20] sm:$0xff]
  %v119 = vld [vmem:[%s1 + $0x28] sm:$0xff]
  %v120 = vld [vmem:[%s1 + $0x30] sm:$0xff]
  %v121 = vld [vmem:[%s1 + $0x38] sm:$0xff]
  %v122 = vld [vmem:[%s1 + $0x40] sm:$0xff]
  %v123 = vld [vmem:[%s1 + $0x48] sm:$0xff]
  %v124 = vld [vmem:[%s1 + $0x50] sm:$0xff]
  %v125 = vld [vmem:[%s1 + $0x58] sm:$0xff]
  %v126 = vld [vmem:[%s1 + $0x60] sm:$0xff]
  %v127 = vld [vmem:[%s1 + $0x68] sm:$0xff]
  %v128 = vld [vmem:[%s1 + $0x70] sm:$0xff]
  %v129 = vld [vmem:[%s1 + $0x78] sm:$0xff]
  %130 = vmatpush.msra.mxu0 %v129
  %131 = vmatpush.msra.mxu0 %v128
  %132 = vmatpush.msra.mxu0 %v127
  %133 = vmatpush.msra.mxu0 %v126
  %134 = vmatpush.msra.mxu0 %v125
  %135 = vmatpush.msra.mxu0 %v124
  %136 = vmatpush.msra.mxu0 %v123
  %137 = vmatpush.msra.mxu0 %v122
  %138 = vmatpush.msra.mxu0 %v121
  %139 = vmatpush.msra.mxu0 %v120
  %140 = vmatpush.msra.mxu0 %v119
  %141 = vmatpush.msra.mxu0 %v118
  %142 = vmatpush.msra.mxu0 %v117
  %143 = vmatpush.msra.mxu0 %v116
  %144 = vmatpush.msra.mxu0 %v115
  %145 = vmatpush.msra.mxu0 %v114
  %146 = vmatmul.f32.gmra.mxu0 %v82
  %v147 = vpop.f32.mrf.mxu0
  %v148 = vadd.f32 0.0, %v147
  %149 = vmatmul.f32.gmra.mxu0 %v83
  %v150 = vpop.f32.mrf.mxu0
  %v151 = vadd.f32 0.0, %v150
  %152 = vmatmul.f32.gmra.mxu0 %v84
  %v153 = vpop.f32.mrf.mxu0
  %v154 = vadd.f32 0.0, %v153
  %155 = vmatmul.f32.gmra.mxu0 %v85
  %v156 = vpop.f32.mrf.mxu0
  %v157 = vadd.f32 0.0, %v156
  %158 = vmatmul.f32.gmra.mxu0 %v86
  %v159 = vpop.f32.mrf.mxu0
  %v160 = vadd.f32 0.0, %v159
  %161 = vmatmul.f32.gmra.mxu0 %v87
  %v162 = vpop.f32.mrf.mxu0
  %v163 = vadd.f32 0.0, %v162
  %164 = vmatmul.f32.gmra.mxu0 %v88
  %v165 = vpop.f32.mrf.mxu0
  %v166 = vadd.f32 0.0, %v165
  %167 = vmatmul.f32.gmra.mxu0 %v89
  %v168 = vpop.f32.mrf.mxu0
  %v169 = vadd.f32 0.0, %v168
  %170 = vmatmul.f32.gmra.mxu0 %v90
  %v171 = vpop.f32.mrf.mxu0
  %v172 = vadd.f32 0.0, %v171
  %173 = vmatmul.f32.gmra.mxu0 %v91
  %v174 = vpop.f32.mrf.mxu0
  %v175 = vadd.f32 0.0, %v174
  %176 = vmatmul.f32.gmra.mxu0 %v92
  %v177 = vpop.f32.mrf.mxu0
  %v178 = vadd.f32 0.0, %v177
  %179 = vmatmul.f32.gmra.mxu0 %v93
  %v180 = vpop.f32.mrf.mxu0
  %v181 = vadd.f32 0.0, %v180
  %182 = vmatmul.f32.gmra.mxu0 %v94
  %v183 = vpop.f32.mrf.mxu0
  %v184 = vadd.f32 0.0, %v183
  %185 = vmatmul.f32.gmra.mxu0 %v95
  %v186 = vpop.f32.mrf.mxu0
  %v187 = vadd.f32 0.0, %v186
  %188 = vmatmul.f32.gmra.mxu0 %v96
  %v189 = vpop.f32.mrf.mxu0
  %v190 = vadd.f32 0.0, %v189
  %191 = vmatmul.f32.gmra.mxu0 %v97
  %v192 = vpop.f32.mrf.mxu0
  %v193 = vadd.f32 0.0, %v192
  %194 = vmatmul.f32.gmra.mxu0 %v98
  %v195 = vpop.f32.mrf.mxu0
  %v196 = vadd.f32 0.0, %v195
  %197 = vmatmul.f32.gmra.mxu0 %v99
  %v198 = vpop.f32.mrf.mxu0
  %v199 = vadd.f32 0.0, %v198
  %200 = vmatmul.f32.gmra.mxu0 %v100
  %v201 = vpop.f32.mrf.mxu0
  %v202 = vadd.f32 0.0, %v201
  %203 = vmatmul.f32.gmra.mxu0 %v101
  %v204 = vpop.f32.mrf.mxu0
  %v205 = vadd.f32 0.0, %v204
  %206 = vmatmul.f32.gmra.mxu0 %v102
  %v207 = vpop.f32.mrf.mxu0
  %v208 = vadd.f32 0.0, %v207
  %209 = vmatmul.f32.gmra.mxu0 %v103
  %v210 = vpop.f32.mrf.mxu0
  %v211 = vadd.f32 0.0, %v210
  %212 = vmatmul.f32.gmra.mxu0 %v104
  %v213 = vpop.f32.mrf.mxu0
  %v214 = vadd.f32 0.0, %v213
  %215 = vmatmul.f32.gmra.mxu0 %v105
  %v216 = vpop.f32.mrf.mxu0
  %v217 = vadd.f32 0.0, %v216
  %218 = vmatmul.f32.gmra.mxu0 %v106
  %v219 = vpop.f32.mrf.mxu0
  %v220 = vadd.f32 0.0, %v219
  %221 = vmatmul.f32.gmra.mxu0 %v107
  %v222 = vpop.f32.mrf.mxu0
  %v223 = vadd.f32 0.0, %v222
  %224 = vmatmul.f32.gmra.mxu0 %v108
  %v225 = vpop.f32.mrf.mxu0
  %v226 = vadd.f32 0.0, %v225
  %227 = vmatmul.f32.gmra.mxu0 %v109
  %v228 = vpop.f32.mrf.mxu0
  %v229 = vadd.f32 0.0, %v228
  %230 = vmatmul.f32.gmra.mxu0 %v110
  %v231 = vpop.f32.mrf.mxu0
  %v232 = vadd.f32 0.0, %v231
  %233 = vmatmul.f32.gmra.mxu0 %v111
  %v234 = vpop.f32.mrf.mxu0
  %v235 = vadd.f32 0.0, %v234
  %236 = vmatmul.f32.gmra.mxu0 %v112
  %v237 = vpop.f32.mrf.mxu0
  %v238 = vadd.f32 0.0, %v237
  %239 = vmatmul.f32.gmra.mxu0 %v113
  %v240 = vpop.f32.mrf.mxu0
  %v241 = vadd.f32 0.0, %v240
  %242 = vdwg.mxu0
  %v243 = vadd.f32 %v50, %v148
  %v244 = vadd.f32 %v51, %v151
  %v245 = vadd.f32 %v52, %v154
  %v246 = vadd.f32 %v53, %v157
  %v247 = vadd.f32 %v54, %v160
  %v248 = vadd.f32 %v55, %v163
  %v249 = vadd.f32 %v56, %v166
  %v250 = vadd.f32 %v57, %v169
  %v251 = vadd.f32 %v58, %v172
  %v252 = vadd.f32 %v59, %v175
  %v253 = vadd.f32 %v60, %v178
  %v254 = vadd.f32 %v61, %v181
  %v255 = vadd.f32 %v62, %v184
  %v256 = vadd.f32 %v63, %v187
  %v257 = vadd.f32 %v64, %v190
  %v258 = vadd.f32 %v65, %v193
  %v259 = vadd.f32 %v66, %v196
  %v260 = vadd.f32 %v67, %v199
  %v261 = vadd.f32 %v68, %v202
  %v262 = vadd.f32 %v69, %v205
  %v263 = vadd.f32 %v70, %v208
  %v264 = vadd.f32 %v71, %v211
  %v265 = vadd.f32 %v72, %v214
  %v266 = vadd.f32 %v73, %v217
  %v267 = vadd.f32 %v74, %v220
  %v268 = vadd.f32 %v75, %v223
  %v269 = vadd.f32 %v76, %v226
  %v270 = vadd.f32 %v77, %v229
  %v271 = vadd.f32 %v78, %v232
  %v272 = vadd.f32 %v79, %v235
  %v273 = vadd.f32 %v80, %v238
  %v274 = vadd.f32 %v81, %v241
  %275 = vst [vmem:[#allocation2] sm:$0xff] %v243
  %276 = vst [vmem:[#allocation2 + $0x8] sm:$0xff] %v244
  %277 = vst [vmem:[#allocation2 + $0x10] sm:$0xff] %v245
  %278 = vst [vmem:[#allocation2 + $0x18] sm:$0xff] %v246
  %279 = vst [vmem:[#allocation2 + $0x20] sm:$0xff] %v247
  %280 = vst [vmem:[#allocation2 + $0x28] sm:$0xff] %v248
  %281 = vst [vmem:[#allocation2 + $0x30] sm:$0xff] %v249
  %282 = vst [vmem:[#allocation2 + $0x38] sm:$0xff] %v250
  %283 = vst [vmem:[#allocation2 + $0x40] sm:$0xff] %v251
  %284 = vst [vmem:[#allocation2 + $0x48] sm:$0xff] %v252
  %285 = vst [vmem:[#allocation2 + $0x50] sm:$0xff] %v253
  %286 = vst [vmem:[#allocation2 + $0x58] sm:$0xff] %v254
  %287 = vst [vmem:[#allocation2 + $0x60] sm:$0xff] %v255
  %288 = vst [vmem:[#allocation2 + $0x68] sm:$0xff] %v256
  %289 = vst [vmem:[#allocation2 + $0x70] sm:$0xff] %v257
  %290 = vst [vmem:[#allocation2 + $0x78] sm:$0xff] %v258
  %291 = vst [vmem:[#allocation2 + $0x80] sm:$0xff] %v259
  %292 = vst [vmem:[#allocation2 + $0x88] sm:$0xff] %v260
  %293 = vst [vmem:[#allocation2 + $0x90] sm:$0xff] %v261
  %294 = vst [vmem:[#allocation2 + $0x98] sm:$0xff] %v262
  %295 = vst [vmem:[#allocation2 + $0xa0] sm:$0xff] %v263
  %296 = vst [vmem:[#allocation2 + $0xa8] sm:$0xff] %v264
  %297 = vst [vmem:[#allocation2 + $0xb0] sm:$0xff] %v265
  %298 = vst [vmem:[#allocation2 + $0xb8] sm:$0xff] %v266
  %299 = vst [vmem:[#allocation2 + $0xc0] sm:$0xff] %v267
  %300 = vst [vmem:[#allocation2 + $0xc8] sm:$0xff] %v268
  %301 = vst [vmem:[#allocation2 + $0xd0] sm:$0xff] %v269
  %302 = vst [vmem:[#allocation2 + $0xd8] sm:$0xff] %v270
  %303 = vst [vmem:[#allocation2 + $0xe0] sm:$0xff] %v271
  %304 = vst [vmem:[#allocation2 + $0xe8] sm:$0xff] %v272
  %305 = vst [vmem:[#allocation2 + $0xf0] sm:$0xff] %v273
  %306 = vst [vmem:[#allocation2 + $0xf8] sm:$0xff] %v274
  // Predicated region
  $region14: #{resblock_forward.4} parent=0 // pred_check
    %p307 = pneg %p14
  $region15: #{resblock_forward.4} parent=0 // pred_check_branch
    %309 = sbr.rel (%p307) target = $region17
  $region16: #{resblock_forward.4} parent=0 // pred_region
    %v310 = vld [vmem:[#allocation2] sm:$0xff]
    %v311 = vld [vmem:[#allocation2 + $0x8] sm:$0xff]
    %v312 = vld [vmem:[#allocation2 + $0x10] sm:$0xff]
    %v313 = vld [vmem:[#allocation2 + $0x18] sm:$0xff]
    %v314 = vld [vmem:[#allocation2 + $0x20] sm:$0xff]
    %v315 = vld [vmem:[#allocation2 + $0x28] sm:$0xff]
    %v316 = vld [vmem:[#allocation2 + $0x30] sm:$0xff]
    %v317 = vld [vmem:[#allocation2 + $0x38] sm:$0xff]
    %v318 = vld [vmem:[#allocation2 + $0x40] sm:$0xff]
    %v319 = vld [vmem:[#allocation2 + $0x48] sm:$0xff]
    %v320 = vld [vmem:[#allocation2 + $0x50] sm:$0xff]
    %v321 = vld [vmem:[#allocation2 + $0x58] sm:$0xff]
    %v322 = vld [vmem:[#allocation2 + $0x60] sm:$0xff]
    %v323 = vld [vmem:[#allocation2 + $0x68] sm:$0xff]
    %v324 = vld [vmem:[#allocation2 + $0x70] sm:$0xff]
    %v325 = vld [vmem:[#allocation2 + $0x78] sm:$0xff]
    %v326 = vld [vmem:[#allocation2 + $0x80] sm:$0xff]
    %v327 = vld [vmem:[#allocation2 + $0x88] sm:$0xff]
    %v328 = vld [vmem:[#allocation2 + $0x90] sm:$0xff]
    %v329 = vld [vmem:[#allocation2 + $0x98] sm:$0xff]
    %v330 = vld [vmem:[#allocation2 + $0xa0] sm:$0xff]
    %v331 = vld [vmem:[#allocation2 + $0xa8] sm:$0xff]
    %v332 = vld [vmem:[#allocation2 + $0xb0] sm:$0xff]
    %v333 = vld [vmem:[#allocation2 + $0xb8] sm:$0xff]
    %v334 = vld [vmem:[#allocation2 + $0xc0] sm:$0xff]
    %v335 = vld [vmem:[#allocation2 + $0xc8] sm:$0xff]
    %v336 = vld [vmem:[#allocation2 + $0xd0] sm:$0xff]
    %v337 = vld [vmem:[#allocation2 + $0xd8] sm:$0xff]
    %v338 = vld [vmem:[#allocation2 + $0xe0] sm:$0xff]
    %v339 = vld [vmem:[#allocation2 + $0xe8] sm:$0xff]
    %v340 = vld [vmem:[#allocation2 + $0xf0] sm:$0xff]
    %v341 = vld [vmem:[#allocation2 + $0xf8] sm:$0xff]
    %342 = vst [vmem:[%s2] sm:$0xff] %v310
    %343 = vst [vmem:[%s2 + $0x8] sm:$0xff] %v311
    %344 = vst [vmem:[%s2 + $0x10] sm:$0xff] %v312
    %345 = vst [vmem:[%s2 + $0x18] sm:$0xff] %v313
    %346 = vst [vmem:[%s2 + $0x20] sm:$0xff] %v314
    %347 = vst [vmem:[%s2 + $0x28] sm:$0xff] %v315
    %348 = vst [vmem:[%s2 + $0x30] sm:$0xff] %v316
    %349 = vst [vmem:[%s2 + $0x38] sm:$0xff] %v317
    %350 = vst [vmem:[%s2 + $0x40] sm:$0xff] %v318
    %351 = vst [vmem:[%s2 + $0x48] sm:$0xff] %v319
    %352 = vst [vmem:[%s2 + $0x50] sm:$0xff] %v320
    %353 = vst [vmem:[%s2 + $0x58] sm:$0xff] %v321
    %354 = vst [vmem:[%s2 + $0x60] sm:$0xff] %v322
    %355 = vst [vmem:[%s2 + $0x68] sm:$0xff] %v323
    %356 = vst [vmem:[%s2 + $0x70] sm:$0xff] %v324
    %357 = vst [vmem:[%s2 + $0x78] sm:$0xff] %v325
    %358 = vst [vmem:[%s2 + $0x80] sm:$0xff] %v326
    %359 = vst [vmem:[%s2 + $0x88] sm:$0xff] %v327
    %360 = vst [vmem:[%s2 + $0x90] sm:$0xff] %v328
    %361 = vst [vmem:[%s2 + $0x98] sm:$0xff] %v329
    %362 = vst [vmem:[%s2 + $0xa0] sm:$0xff] %v330
    %363 = vst [vmem:[%s2 + $0xa8] sm:$0xff] %v331
    %364 = vst [vmem:[%s2 + $0xb0] sm:$0xff] %v332
    %365 = vst [vmem:[%s2 + $0xb8] sm:$0xff] %v333
    %366 = vst [vmem:[%s2 + $0xc0] sm:$0xff] %v334
    %367 = vst [vmem:[%s2 + $0xc8] sm:$0xff] %v335
    %368 = vst [vmem:[%s2 + $0xd0] sm:$0xff] %v336
    %369 = vst [vmem:[%s2 + $0xd8] sm:$0xff] %v337
    %370 = vst [vmem:[%s2 + $0xe0] sm:$0xff] %v338
    %371 = vst [vmem:[%s2 + $0xe8] sm:$0xff] %v339
    %372 = vst [vmem:[%s2 + $0xf0] sm:$0xff] %v340
    %373 = vst [vmem:[%s2 + $0xf8] sm:$0xff] %v341
    %v374 = vadd.f32 %v310, %v311
    %v375 = vadd.f32 %v374, %v312
    %v376 = vadd.f32 %v375, %v313
    %v377 = vadd.f32 %v376, %v314
    %v378 = vadd.f32 %v377, %v315
    %v379 = vadd.f32 %v378, %v316
    %v380 = vadd.f32 %v379, %v317
    %v381 = vadd.f32 %v380, %v318
    %v382 = vadd.f32 %v381, %v319
    %v383 = vadd.f32 %v382, %v320
    %v384 = vadd.f32 %v383, %v321
    %v385 = vadd.f32 %v384, %v322
    %v386 = vadd.f32 %v385, %v323
    %v387 = vadd.f32 %v386, %v324
    %v388 = vadd.f32 %v387, %v325
    %v389 = vadd.f32 %v388, %v326
    %v390 = vadd.f32 %v389, %v327
    %v391 = vadd.f32 %v390, %v328
    %v392 = vadd.f32 %v391, %v329
    %v393 = vadd.f32 %v392, %v330
    %v394 = vadd.f32 %v393, %v331
    %v395 = vadd.f32 %v394, %v332
    %v396 = vadd.f32 %v395, %v333
    %v397 = vadd.f32 %v396, %v334
    %v398 = vadd.f32 %v397, %v335
    %v399 = vadd.f32 %v398, %v336
    %v400 = vadd.f32 %v399, %v337
    %v401 = vadd.f32 %v400, %v338
    %v402 = vadd.f32 %v401, %v339
    %v403 = vadd.f32 %v402, %v340
    %v404 = vadd.f32 %v403, %v341
    %405 = vst [vmem:[%s3] sm:$0xff] %v404
    %v406 = vmul.f32 %v310, %v310
    %v407 = vmul.f32 %v311, %v311
    %v408 = vmul.f32 %v312, %v312
    %v409 = vmul.f32 %v313, %v313
    %v410 = vmul.f32 %v314, %v314
    %v411 = vmul.f32 %v315, %v315
    %v412 = vmul.f32 %v316, %v316
    %v413 = vmul.f32 %v317, %v317
    %v414 = vmul.f32 %v318, %v318
    %v415 = vmul.f32 %v319, %v319
    %v416 = vmul.f32 %v320, %v320
    %v417 = vmul.f32 %v321, %v321
    %v418 = vmul.f32 %v322, %v322
    %v419 = vmul.f32 %v323, %v323
    %v420 = vmul.f32 %v324, %v324
    %v421 = vmul.f32 %v325, %v325
    %v422 = vmul.f32 %v326, %v326
    %v423 = vmul.f32 %v327, %v327
    %v424 = vmul.f32 %v328, %v328
    %v425 = vmul.f32 %v329, %v329
    %v426 = vmul.f32 %v330, %v330
    %v427 = vmul.f32 %v331, %v331
    %v428 = vmul.f32 %v332, %v332
    %v429 = vmul.f32 %v333, %v333
    %v430 = vmul.f32 %v334, %v334
    %v431 = vmul.f32 %v335, %v335
    %v432 = vmul.f32 %v336, %v336
    %v433 = vmul.f32 %v337, %v337
    %v434 = vmul.f32 %v338, %v338
    %v435 = vmul.f32 %v339, %v339
    %v436 = vmul.f32 %v340, %v340
    %v437 = vmul.f32 %v341, %v341
    %v438 = vadd.f32 %v406, %v407
    %v439 = vadd.f32 %v438, %v408
    %v440 = vadd.f32 %v439, %v409
    %v441 = vadd.f32 %v440, %v410
    %v442 = vadd.f32 %v441, %v411
    %v443 = vadd.f32 %v442, %v412
    %v444 = vadd.f32 %v443, %v413
    %v445 = vadd.f32 %v444, %v414
    %v446 = vadd.f32 %v445, %v415
    %v447 = vadd.f32 %v446, %v416
    %v448 = vadd.f32 %v447, %v417
    %v449 = vadd.f32 %v448, %v418
    %v450 = vadd.f32 %v449, %v419
    %v451 = vadd.f32 %v450, %v420
    %v452 = vadd.f32 %v451, %v421
    %v453 = vadd.f32 %v452, %v422
    %v454 = vadd.f32 %v453, %v423
    %v455 = vadd.f32 %v454, %v424
    %v456 = vadd.f32 %v455, %v425
    %v457 = vadd.f32 %v456, %v426
    %v458 = vadd.f32 %v457, %v427
    %v459 = vadd.f32 %v458, %v428
    %v460 = vadd.f32 %v459, %v429
    %v461 = vadd.f32 %v460, %v430
    %v462 = vadd.f32 %v461, %v431
    %v463 = vadd.f32 %v462, %v432
    %v464 = vadd.f32 %v463, %v433
    %v465 = vadd.f32 %v464, %v434
    %v466 = vadd.f32 %v465, %v435
    %v467 = vadd.f32 %v466, %v436
    %v468 = vadd.f32 %v467, %v437
    %469 = vst [vmem:[%s4] sm:$0xff] %v468
  $region17: #{resblock_forward.4} parent=0 // pred_fallthru
    _
  // Predicated region
  $region18: #{resblock_forward.4} parent=0 // pred_check
    _
  $region19: #{resblock_forward.4} parent=0 // pred_check_branch
    %471 = sbr.rel (0) target = $region21
  $region20: #{resblock_forward.4} parent=0 // pred_region
    _
  $region21: #{resblock_forward.4} parent=0 // pred_fallthru
    _
  // Predicated region
  $region22: #{resblock_forward.4} parent=0 // pred_check
    _
  $region23: #{resblock_forward.4} parent=0 // pred_check_branch
    %473 = sbr.rel (0) target = $region25
  $region24: #{resblock_forward.4} parent=0 // pred_region
    _
  $region25: #{resblock_forward.4} parent=0 // pred_fallthru
    _
  // Predicated region
  $region26: #{resblock_forward.4} parent=0 // pred_check
    _
  $region27: #{resblock_forward.4} parent=0 // pred_check_branch
    %475 = sbr.rel (0) target = $region29
  $region28: #{resblock_forward.4} parent=0 // pred_region
    _
  $region29: #{resblock_forward.4} parent=0 // pred_fallthru
    _
  // Predicated region
  $region30: #{resblock_forward.4} parent=0 // pred_check
    _
  $region31: #{resblock_forward.4} parent=0 // pred_check_branch
    %477 = sbr.rel (0) target = $region33
  $region32: #{resblock_forward.4} parent=0 // pred_region
    _
  $region33: #{resblock_forward.4} parent=0 // pred_fallthru
    _
  // Predicated region
  $region34: #{resblock_forward.4} parent=0 // pred_check
    _
  $region35: #{resblock_forward.4} parent=0 // pred_check_branch
    %479 = sbr.rel (0) target = $region37
  $region36: #{resblock_forward.4} parent=0 // pred_region
    _
  $region37: #{resblock_forward.4} parent=0 // pred_fallthru
    _
  // Predicated region
  $region38: #{resblock_forward.4} parent=0 // pred_check
    _
  $region39: #{resblock_forward.4} parent=0 // pred_check_branch
    %481 = sbr.rel (0) target = $region41
  $region40: #{resblock_forward.4} parent=0 // pred_region
    _
  $region41: #{resblock_forward.4} parent=0 // pred_fallthru
    _

</llo_original>
